<compile_context>
chip_gen: v7x
topology: tpu7x:2x2x1
jax: 0.10.0
libtpu: 0.0.40
codegen_flags: <defaults>
</compile_context>

<pallas_src>
import functools

import jax
import jax.numpy as jnp
from jax.experimental import pallas as pl
from jax.experimental.pallas import tpu as pltpu


def _vmem_capacity_bytes():
    """Physical VMEM per core; conservative (v7x-sized) fallback."""
    try:
        cap = getattr(pltpu.get_tpu_info(), "vmem_capacity_bytes", None)
        if cap:
            return int(cap)
    except Exception:
        pass
    return 64 << 20


def _round_up(v, m):
    return ((v + m - 1) // m) * m


def _pick_pow2_tile(per_lane_bytes, budget_bytes, hw, cap):
    """Largest 128*2^k lane tile fitting `budget_bytes` of live VMEM, never
    wider than needed for `hw` and never wider than `cap`."""
    t = 128
    while t < hw and t * 2 <= cap and per_lane_bytes * (t * 2) <= budget_bytes:
        t *= 2
    return t


# ---------------------------------------------------------------------------
# Kernels
# ---------------------------------------------------------------------------
def _fused_kernel(x_ref, scale_ref, bias_ref, mscale_ref, out_ref, *, hw, c, eps):
    """Single-pass: stats + affine fold + apply on one resident (C, HW) slab."""
    x = x_ref[...].astype(jnp.float32)                       # (1, C, hw_pad)
    hw_pad = x.shape[-1]
    mean = jnp.sum(x, axis=-1, keepdims=True) * (1.0 / hw)   # (1, C, 1)
    diff = x - mean
    ssq = jnp.sum(diff * diff, axis=-1, keepdims=True)       # centered
    if hw_pad != hw:
        # zero-padded lanes each contributed (0 - mean)^2; remove them.
        ssq = ssq - (hw_pad - hw) * (mean * mean)
    var = jnp.maximum(ssq, 0.0) / (hw - 1.0)                 # unbiased (torch.std)
    std = jnp.sqrt(var)
    mean_mean = jnp.mean(mean, axis=1, keepdims=True)        # (1, 1, 1)
    mvar = jnp.sum((mean - mean_mean) ** 2, axis=1, keepdims=True) / (c - 1.0)
    mean_std = jnp.sqrt(mvar)

    scale = scale_ref[...].astype(jnp.float32)               # (1, C, 1)
    bias = bias_ref[...].astype(jnp.float32)
    mscale = mscale_ref[...].astype(jnp.float32)

    alpha = scale / (std + eps)                               # (1, C, 1)
    beta = bias + mscale * (mean - mean_mean) / (mean_std + eps) - alpha * mean
    out_ref[...] = (alpha * x + beta).astype(out_ref.dtype)


def _stats_kernel(x_ref, sum_ref, sumsq_ref):
    """Accumulate lane-dense (1, C, 128) partial sum / sum-of-squares."""
    @pl.when(pl.program_id(1) == 0)
    def _():
        sum_ref[...] = jnp.zeros_like(sum_ref)
        sumsq_ref[...] = jnp.zeros_like(sumsq_ref)

    x = x_ref[...].astype(jnp.float32)                        # (1, C, tile1)
    nt = x.shape[-1] // 128
    s = sum_ref[...]
    ss = sumsq_ref[...]
    for k in range(nt):                                       # unrolled VALU adds
        xi = x[..., k * 128:(k + 1) * 128]
        s = s + xi
        ss = ss + xi * xi
    sum_ref[...] = s
    sumsq_ref[...] = ss


def _apply_kernel(x_ref, alpha_ref, beta_ref, out_ref):
    """out = alpha * x + beta with per-channel (sublane) alpha/beta."""
    x = x_ref[...].astype(jnp.float32)                        # (1, C, tile2)
    out_ref[...] = (alpha_ref[...] * x + beta_ref[...]).astype(out_ref.dtype)


# ---------------------------------------------------------------------------
# Wrapper
# ---------------------------------------------------------------------------
def adaptive_instance_norm_pp(x, style, params, *, eps=1e-6, force_two_pass=False):
    """x: (B, C, H, W) NCHW; style: (B, A). Returns (B, C, H, W)."""
    B, C, H, W = x.shape
    HW = H * W
    in_b = x.dtype.itemsize
    c_pad = _round_up(C, 8)               # sublane padding of the channel axis
    # TODO(synk): pack small C onto full 8-sublane vregs by collapsing (B, C)
    # rows into a (B*C, HW) layout (needs grouped cross-row mean reductions).

    # VMEM budgets: generation-aware (128 MiB v5e/v6e, 64 MiB v7x).
    vmem_cap = _vmem_capacity_bytes()
    vmem_limit = min((vmem_cap * 3) // 4, 96 << 20)
    live_budget = (vmem_limit * 3) // 5    # headroom for compiler scratch

    # ---- style -> affine params: one fused (B, A) @ (A, 3C) GEMM ----
    w_all = jnp.concatenate(
        [params["scale_w"], params["bias_w"], params["mean_scale_w"]],
        axis=0).T.astype(jnp.float32)                         # (A, 3C)
    b_all = jnp.concatenate(
        [params["scale_b"], params["bias_b"], params["mean_scale_b"]]
    ).astype(jnp.float32)                                     # (3C,)
    aff = style.astype(jnp.float32) @ w_all + b_all           # (B, 3C)
    scale = aff[:, :C].reshape(B, C, 1)
    bias = aff[:, C:2 * C].reshape(B, C, 1)
    mscale = aff[:, 2 * C:].reshape(B, C, 1)

    xf = x.reshape(B, C, HW)

    # ---- fast path: fused single-pass kernel (x DMA'd from HBM once) ----
    hw_pad1 = _round_up(HW, 128)
    # per-lane live bytes: double-buffered in + out slabs + ~3 f32 temps.
    fused_live = c_pad * hw_pad1 * (2 * in_b + 2 * in_b + 3 * 4)
    if not force_two_pass and fused_live <= live_budget:
        xi = xf if hw_pad1 == HW else jnp.pad(
            xf, ((0, 0), (0, 0), (0, hw_pad1 - HW)))
        out = pl.pallas_call(
            functools.partial(_fused_kernel, hw=HW, c=C, eps=eps),
            out_shape=jax.ShapeDtypeStruct((B, C, hw_pad1), x.dtype),
            grid=(B,),
            in_specs=[
                pl.BlockSpec((1, C, hw_pad1), lambda b: (b, 0, 0)),   # x slab
                pl.BlockSpec((1, C, 1), lambda b: (b, 0, 0)),         # scale
                pl.BlockSpec((1, C, 1), lambda b: (b, 0, 0)),         # bias
                pl.BlockSpec((1, C, 1), lambda b: (b, 0, 0)),         # mean_scale
            ],
            out_specs=pl.BlockSpec((1, C, hw_pad1), lambda b: (b, 0, 0)),
            compiler_params=pltpu.CompilerParams(
                dimension_semantics=("parallel",),
                vmem_limit_bytes=vmem_limit),
        )(xi, scale, bias, mscale)
        if hw_pad1 != HW:
            out = out[..., :HW]
        return out.reshape(B, C, H, W)

    # ---- fallback: two-pass streaming scheme for very large C*HW slabs ----
    # Pass 1 streams only the input (+ tiny accumulators) -> larger tile than
    # pass 2, which double-buffers input AND output.
    per_lane1 = c_pad * (2 * in_b + 4)
    per_lane2 = c_pad * (2 * in_b + 2 * in_b + 4)
    tile1 = _pick_pow2_tile(per_lane1, live_budget, HW, cap=8192)
    tile2 = _pick_pow2_tile(per_lane2, live_budget, HW, cap=32768)
    big = max(tile1, tile2)                # both 128*2^k -> both divide hw_pad
    hw_pad = _round_up(HW, big)
    if hw_pad != HW:
        xf = jnp.pad(xf, ((0, 0), (0, 0), (0, hw_pad - HW)))

    sums, sumsqs = pl.pallas_call(
        _stats_kernel,
        out_shape=(jax.ShapeDtypeStruct((B, C, 128), jnp.float32),
                   jax.ShapeDtypeStruct((B, C, 128), jnp.float32)),
        grid=(B, hw_pad // tile1),
        in_specs=[pl.BlockSpec((1, C, tile1), lambda b, h: (b, 0, h))],
        out_specs=(pl.BlockSpec((1, C, 128), lambda b, h: (b, 0, 0)),
                   pl.BlockSpec((1, C, 128), lambda b, h: (b, 0, 0))),
        compiler_params=pltpu.CompilerParams(
            dimension_semantics=("parallel", "arbitrary"),
            vmem_limit_bytes=vmem_limit),
    )(xf)
    # TODO(synk): on v7x, split the HW reduction over both TensorCores when B
    # is small/odd (partial (B, 2, C, 128) accumulators combined in the glue).

    # Tiny (B, C) glue math in plain JAX.
    s = jnp.sum(sums, axis=-1)                                # (B, C)
    ss = jnp.sum(sumsqs, axis=-1)
    mean = s / HW
    # TODO(synk): shifted/compensated accumulation for extremely large HW with
    # non-zero channel means (the fused fast path is already centered).
    var = jnp.maximum((ss - HW * mean * mean) / (HW - 1.0), 0.0)
    std = jnp.sqrt(var)
    mean_mean = jnp.mean(mean, axis=1, keepdims=True)         # (B, 1)
    mean_std = jnp.sqrt(
        jnp.sum((mean - mean_mean) ** 2, axis=1, keepdims=True) / (C - 1.0))

    alpha = scale[..., 0] / (std + eps)                       # (B, C)
    beta = (bias[..., 0]
            + mscale[..., 0] * (mean - mean_mean) / (mean_std + eps)
            - alpha * mean)
    alpha3 = alpha.reshape(B, C, 1)
    beta3 = beta.reshape(B, C, 1)

    out = pl.pallas_call(
        _apply_kernel,
        out_shape=jax.ShapeDtypeStruct((B, C, hw_pad), x.dtype),
        grid=(B, hw_pad // tile2),
        in_specs=[
            pl.BlockSpec((1, C, tile2), lambda b, h: (b, 0, h)),     # x
            pl.BlockSpec((1, C, 1), lambda b, h: (b, 0, 0)),         # alpha
            pl.BlockSpec((1, C, 1), lambda b, h: (b, 0, 0)),         # beta
        ],
        out_specs=pl.BlockSpec((1, C, tile2), lambda b, h: (b, 0, h)),
        compiler_params=pltpu.CompilerParams(
            dimension_semantics=("parallel", "parallel"),
            vmem_limit_bytes=vmem_limit),
    )(xf, alpha3, beta3)
    if hw_pad != HW:
        out = out[..., :HW]
    return out.reshape(B, C, H, W)


# ---------------------------------------------------------------------------
# Pure-JAX reference mirroring the PyTorch forward exactly.
# ---------------------------------------------------------------------------
def _reference(x, style, params):
    B, C, H, W = x.shape
    xv = x.reshape(B, C, -1).astype(jnp.float32)
    mean = xv.mean(axis=-1)                                            # (B, C)
    std = jnp.sqrt(((xv - mean[..., None]) ** 2).sum(-1) / (xv.shape[-1] - 1))
    mean_mean = mean.mean(axis=1, keepdims=True)                       # (B, 1)
    mean_std = jnp.sqrt(((mean - mean_mean) ** 2).sum(1, keepdims=True) / (C - 1))

    def lin(w, b):
        return style.astype(jnp.float32) @ w.T + b

    scale = lin(params["scale_w"], params["scale_b"])                  # (B, C)
    bias = lin(params["bias_w"], params["bias_b"])
    mscale = lin(params["mean_scale_w"], params["mean_scale_b"])

    result = (scale[:, :, None, None]
              * (x - mean[:, :, None, None]) / (std[:, :, None, None] + 1e-6)
              + bias[:, :, None, None])
    correction = (mscale * (mean - mean_mean) / (mean_std + 1e-6))[:, :, None, None]
    return result + correction


if __name__ == "__main__":
    B, C, H, W = 2, 4, 16, 16      # in_size = C = 4
    A = 8                          # ada_size = 8

    key = jax.random.PRNGKey(0)
    kx, ks, k1, k2, k3, k4, k5, k6 = jax.random.split(key, 8)

    x = jax.random.normal(kx, (B, C, H, W), dtype=jnp.float32)
    style = jax.random.normal(ks, (B, A), dtype=jnp.float32)

    # Deterministic init mimicking nn.Linear's U(-1/sqrt(A), 1/sqrt(A)).
    bound = 1.0 / (A ** 0.5)
    params = {
        "scale_w": jax.random.uniform(k1, (C, A), jnp.float32, -bound, bound),
        "scale_b": jax.random.uniform(k2, (C,), jnp.float32, -bound, bound),
        "bias_w": jax.random.uniform(k3, (C, A), jnp.float32, -bound, bound),
        "bias_b": jax.random.uniform(k4, (C,), jnp.float32, -bound, bound),
        "mean_scale_w": jax.random.uniform(k5, (C, A), jnp.float32, -bound, bound),
        "mean_scale_b": jax.random.uniform(k6, (C,), jnp.float32, -bound, bound),
    }

    ref = _reference(x, style, params)

    # Fast path (fused single-pass kernel).
    fwd = jax.jit(adaptive_instance_norm_pp)
    out = jax.block_until_ready(fwd(x, style, params))
    assert out.shape == (B, C, H, W)
    assert jnp.allclose(out, ref, atol=1e-4, rtol=1e-4), "fused path mismatch"

    # Also exercise the two-pass streaming fallback on the same data.
    fwd2 = jax.jit(functools.partial(adaptive_instance_norm_pp, force_two_pass=True))
    out2 = jax.block_until_ready(fwd2(x, style, params))
    assert jnp.allclose(out2, ref, atol=1e-4, rtol=1e-4), "two-pass path mismatch"

    print("KERNEL_OK")
</pallas_src>

<mosaic_0001>
module attributes {stable_mosaic.version = 11 : i64} {
  func.func @_fused_kernel(%arg0: i32, %arg1: memref<1x4x256xf32, #tpu.memory_space<vmem>>, %arg2: memref<1x4x1xf32, #tpu.memory_space<vmem>>, %arg3: memref<1x4x1xf32, #tpu.memory_space<vmem>>, %arg4: memref<1x4x1xf32, #tpu.memory_space<vmem>>, %arg5: memref<1x4x256xf32, #tpu.memory_space<vmem>>) attributes {dimension_semantics = [#tpu.dimension_semantics<parallel>], iteration_bounds = array<i64: 2>, scalar_prefetch = 0 : i64, scratch_operands = 0 : i64, tpu.core_type = #tpu.core_type<tc>, window_params = [{transform_indices = @transform_0, window_bounds = array<i64: 1, 4, 256>}, {transform_indices = @transform_1, window_bounds = array<i64: 1, 4, 1>}, {transform_indices = @transform_2, window_bounds = array<i64: 1, 4, 1>}, {transform_indices = @transform_3, window_bounds = array<i64: 1, 4, 1>}, {transform_indices = @transform_4, window_bounds = array<i64: 1, 4, 256>}]} {
    %c0 = arith.constant 0 : index
    %c0_0 = arith.constant 0 : index
    %c0_1 = arith.constant 0 : index
    %0 = vector.load %arg1[%c0, %c0_0, %c0_1] : memref<1x4x256xf32, #tpu.memory_space<vmem>>, vector<1x4x256xf32>
    %cst = arith.constant dense<0.000000e+00> : vector<1x4xf32>
    %1 = vector.multi_reduction <add>, %0, %cst [2] : vector<1x4x256xf32> to vector<1x4xf32>
    %2 = vector.shape_cast %1 : vector<1x4xf32> to vector<1x4x1xf32>
    %cst_2 = arith.constant 3.906250e-03 : f32
    %3 = vector.broadcast %cst_2 : f32 to vector<1x4x1xf32>
    %4 = arith.mulf %2, %3 : vector<1x4x1xf32>
    %5 = vector.broadcast %4 : vector<1x4x1xf32> to vector<1x4x256xf32>
    %6 = arith.subf %0, %5 : vector<1x4x256xf32>
    %7 = arith.mulf %6, %6 : vector<1x4x256xf32>
    %cst_3 = arith.constant dense<0.000000e+00> : vector<1x4xf32>
    %8 = vector.multi_reduction <add>, %7, %cst_3 [2] : vector<1x4x256xf32> to vector<1x4xf32>
    %9 = vector.shape_cast %8 : vector<1x4xf32> to vector<1x4x1xf32>
    %cst_4 = arith.constant 0.000000e+00 : f32
    %10 = vector.broadcast %cst_4 : f32 to vector<1x4x1xf32>
    %11 = arith.maximumf %9, %10 : vector<1x4x1xf32>
    %cst_5 = arith.constant 2.550000e+02 : f32
    %12 = vector.broadcast %cst_5 : f32 to vector<1x4x1xf32>
    %13 = arith.divf %11, %12 : vector<1x4x1xf32>
    %14 = math.sqrt %13 : vector<1x4x1xf32>
    %cst_6 = arith.constant dense<0.000000e+00> : vector<1x1xf32>
    %15 = vector.multi_reduction <add>, %4, %cst_6 [1] : vector<1x4x1xf32> to vector<1x1xf32>
    %16 = vector.shape_cast %15 : vector<1x1xf32> to vector<1x1x1xf32>
    %cst_7 = arith.constant 4.000000e+00 : f32
    %17 = vector.broadcast %cst_7 : f32 to vector<1x1x1xf32>
    %18 = arith.divf %16, %17 : vector<1x1x1xf32>
    %19 = vector.broadcast %18 : vector<1x1x1xf32> to vector<1x4x1xf32>
    %20 = arith.subf %4, %19 : vector<1x4x1xf32>
    %21 = arith.mulf %20, %20 : vector<1x4x1xf32>
    %cst_8 = arith.constant dense<0.000000e+00> : vector<1x1xf32>
    %22 = vector.multi_reduction <add>, %21, %cst_8 [1] : vector<1x4x1xf32> to vector<1x1xf32>
    %23 = vector.shape_cast %22 : vector<1x1xf32> to vector<1x1x1xf32>
    %cst_9 = arith.constant 3.000000e+00 : f32
    %24 = vector.broadcast %cst_9 : f32 to vector<1x1x1xf32>
    %25 = arith.divf %23, %24 : vector<1x1x1xf32>
    %26 = math.sqrt %25 : vector<1x1x1xf32>
    %c0_10 = arith.constant 0 : index
    %c0_11 = arith.constant 0 : index
    %c0_12 = arith.constant 0 : index
    %27 = vector.load %arg2[%c0_10, %c0_11, %c0_12] : memref<1x4x1xf32, #tpu.memory_space<vmem>>, vector<1x4x1xf32>
    %c0_13 = arith.constant 0 : index
    %c0_14 = arith.constant 0 : index
    %c0_15 = arith.constant 0 : index
    %28 = vector.load %arg3[%c0_13, %c0_14, %c0_15] : memref<1x4x1xf32, #tpu.memory_space<vmem>>, vector<1x4x1xf32>
    %c0_16 = arith.constant 0 : index
    %c0_17 = arith.constant 0 : index
    %c0_18 = arith.constant 0 : index
    %29 = vector.load %arg4[%c0_16, %c0_17, %c0_18] : memref<1x4x1xf32, #tpu.memory_space<vmem>>, vector<1x4x1xf32>
    %cst_19 = arith.constant 9.99999997E-7 : f32
    %30 = vector.broadcast %cst_19 : f32 to vector<1x4x1xf32>
    %31 = arith.addf %14, %30 : vector<1x4x1xf32>
    %32 = arith.divf %27, %31 : vector<1x4x1xf32>
    %33 = vector.broadcast %18 : vector<1x1x1xf32> to vector<1x4x1xf32>
    %34 = arith.subf %4, %33 : vector<1x4x1xf32>
    %35 = arith.mulf %29, %34 : vector<1x4x1xf32>
    %cst_20 = arith.constant 9.99999997E-7 : f32
    %36 = vector.broadcast %cst_20 : f32 to vector<1x1x1xf32>
    %37 = arith.addf %26, %36 : vector<1x1x1xf32>
    %38 = vector.broadcast %37 : vector<1x1x1xf32> to vector<1x4x1xf32>
    %39 = arith.divf %35, %38 : vector<1x4x1xf32>
    %40 = arith.addf %28, %39 : vector<1x4x1xf32>
    %41 = arith.mulf %32, %4 : vector<1x4x1xf32>
    %42 = arith.subf %40, %41 : vector<1x4x1xf32>
    %43 = vector.broadcast %32 : vector<1x4x1xf32> to vector<1x4x256xf32>
    %44 = arith.mulf %43, %0 : vector<1x4x256xf32>
    %45 = vector.broadcast %42 : vector<1x4x1xf32> to vector<1x4x256xf32>
    %46 = arith.addf %44, %45 : vector<1x4x256xf32>
    %c0_21 = arith.constant 0 : index
    %c0_22 = arith.constant 0 : index
    %c0_23 = arith.constant 0 : index
    %47 = vector.load %arg5[%c0_21, %c0_22, %c0_23] : memref<1x4x256xf32, #tpu.memory_space<vmem>>, vector<1x4x256xf32>
    tpu.vector_store %arg5[%c0_21, %c0_22, %c0_23], %46 {strides = array<i32>} : memref<1x4x256xf32, #tpu.memory_space<vmem>>, vector<1x4x256xf32>,
    return
  }
  func.func @transform_0(%arg0: i32) -> (i32, i32, i32) {
    %c0_i32 = arith.constant 0 : i32
    %c0_i32_0 = arith.constant 0 : i32
    %c0_i32_1 = arith.constant 0 : i32
    return %arg0, %c0_i32, %c0_i32_0 : i32, i32, i32
  }
  func.func @transform_1(%arg0: i32) -> (i32, i32, i32) {
    %c0_i32 = arith.constant 0 : i32
    %c0_i32_0 = arith.constant 0 : i32
    %c0_i32_1 = arith.constant 0 : i32
    return %arg0, %c0_i32, %c0_i32_0 : i32, i32, i32
  }
  func.func @transform_2(%arg0: i32) -> (i32, i32, i32) {
    %c0_i32 = arith.constant 0 : i32
    %c0_i32_0 = arith.constant 0 : i32
    %c0_i32_1 = arith.constant 0 : i32
    return %arg0, %c0_i32, %c0_i32_0 : i32, i32, i32
  }
  func.func @transform_3(%arg0: i32) -> (i32, i32, i32) {
    %c0_i32 = arith.constant 0 : i32
    %c0_i32_0 = arith.constant 0 : i32
    %c0_i32_1 = arith.constant 0 : i32
    return %arg0, %c0_i32, %c0_i32_0 : i32, i32, i32
  }
  func.func @transform_4(%arg0: i32) -> (i32, i32, i32) {
    %c0_i32 = arith.constant 0 : i32
    %c0_i32_0 = arith.constant 0 : i32
    %c0_i32_1 = arith.constant 0 : i32
    return %arg0, %c0_i32, %c0_i32_0 : i32, i32, i32
  }
}

</mosaic_0001>

<llo_original>
// kernel: adaptive_instance_norm_pp.1
$region0: #{adaptive_instance_norm_pp.1}
  #allocation0 [shape = 'u32[]', space=smem, size = 0x4, offset = 0x4, fixed_abs, tag = 'smem constant byte address 0x4 - core index']
  #allocation1 [shape = 'u32[144,128]{1,0:T(1,128)}', space=vmem, size = 0x12000, scoped, tag = 'internal scratch']
  %s0 = inlined_call_operand.vmem [shape: f32[2,4,256], index: 0, kind: input, shape index: {}]
  %s1 = inlined_call_operand.vmem [shape: f32[2,4,1], index: 1, kind: input, shape index: {}]
  %s2 = inlined_call_operand.vmem [shape: f32[2,4,1], index: 2, kind: input, shape index: {}]
  %s3 = inlined_call_operand.vmem [shape: f32[2,4,1], index: 3, kind: input, shape index: {}]
  %s4 = inlined_call_operand.vmem [shape: f32[2,4,256], index: 4, kind: output, shape index: {}]
  %s5 = sld [smem:[#allocation0]]
  $region49: #{adaptive_instance_norm_pp.1} parent=0
    _
  %s7 = ssub.s32 1, %s5
  %s8 = scalar_select 0, %s7, %s5
  loop: start=0, step=1, limit=4
  $region2: #{adaptive_instance_norm_pp.1} parent=0 // loop_pre_header
    _
  $region3: #{adaptive_instance_norm_pp.1} parent=0 // loop_header
    %s10 = sphi 0, %s14
    %p11 = scmp.ge.s32.totalorder %s10, 4
    %s20 = sphi 0, %s22
    %s23 = sphi 0, %s20
    %s24 = sphi 0, %s23
    %s40 = sphi 0, %s24
    %s46 = sphi 0, %s48
    %s49 = sphi 0, %s46
    %s50 = sphi 0, %s49
    %s66 = sphi 0, %s50
    %s72 = sphi 0, %s74
    %s75 = sphi 0, %s72
    %s76 = sphi 0, %s75
    %s92 = sphi 0, %s76
    %s98 = sphi 0, %s100
    %s101 = sphi 0, %s98
    %s102 = sphi 0, %s101
    %s118 = sphi 0, %s102
    %s124 = sphi 0, %s126
    %s127 = sphi 0, %s124
    %s128 = sphi 0, %s127
    %s144 = sphi 0, %s128
  $region4: #{adaptive_instance_norm_pp.1} parent=0 // loop_header_branch
    %13 = sbr.rel (%p11) target = $region8
  $region5: #{adaptive_instance_norm_pp.1} parent=0 // loop_body
    %s15 = ssub.s32 %s10, 1
    %s16 = ssub.s32 %s10, 2
    %s17 = sadd.s32 %s10, 1
    %s18 = ssub.s32 %s10, %s17
    %p19 = scmp.eq.s32.totalorder %s18, 0
    %s21 = sadd.s32 %s20, 1
    %s22 = scalar_select %p19, %s20, %s21
    %p25 = pneg %p19
    %p26 = scmp.eq.s32.totalorder %s10, 1
    %p27 = por %p25, %p26
    %p28 = scmp.ne.s32.totalorder %s20, %s23
    %p29 = scmp.eq.s32.totalorder %s10, 0
    %p30 = por %p28, %p29
    %p31 = scmp.ne.s32.totalorder %s20, %s23
    %p32 = scmp.eq.s32.totalorder %s15, 1
    %p33 = por %p31, %p32
    %p34 = scmp.ne.s32.totalorder %s23, %s24
    %p35 = scmp.eq.s32.totalorder %s15, 0
    %p36 = por %p34, %p35
    %p37 = scmp.ne.s32.totalorder %s23, %s24
    %p38 = scmp.eq.s32.totalorder %s16, 1
    %p39 = por %p37, %p38
    %p41 = scmp.ne.s32.totalorder %s24, %s40
    %p42 = scmp.eq.s32.totalorder %s16, 0
    %p43 = por %p41, %p42
    %s44 = ssub.s32 %s10, %s17
    %p45 = scmp.eq.s32.totalorder %s44, 0
    %s47 = sadd.s32 %s46, 1
    %s48 = scalar_select %p45, %s46, %s47
    %p51 = pneg %p45
    %p52 = scmp.eq.s32.totalorder %s10, 1
    %p53 = por %p51, %p52
    %p54 = scmp.ne.s32.totalorder %s46, %s49
    %p55 = scmp.eq.s32.totalorder %s10, 0
    %p56 = por %p54, %p55
    %p57 = scmp.ne.s32.totalorder %s46, %s49
    %p58 = scmp.eq.s32.totalorder %s15, 1
    %p59 = por %p57, %p58
    %p60 = scmp.ne.s32.totalorder %s49, %s50
    %p61 = scmp.eq.s32.totalorder %s15, 0
    %p62 = por %p60, %p61
    %p63 = scmp.ne.s32.totalorder %s49, %s50
    %p64 = scmp.eq.s32.totalorder %s16, 1
    %p65 = por %p63, %p64
    %p67 = scmp.ne.s32.totalorder %s50, %s66
    %p68 = scmp.eq.s32.totalorder %s16, 0
    %p69 = por %p67, %p68
    %s70 = ssub.s32 %s10, %s17
    %p71 = scmp.eq.s32.totalorder %s70, 0
    %s73 = sadd.s32 %s72, 1
    %s74 = scalar_select %p71, %s72, %s73
    %p77 = pneg %p71
    %p78 = scmp.eq.s32.totalorder %s10, 1
    %p79 = por %p77, %p78
    %p80 = scmp.ne.s32.totalorder %s72, %s75
    %p81 = scmp.eq.s32.totalorder %s10, 0
    %p82 = por %p80, %p81
    %p83 = scmp.ne.s32.totalorder %s72, %s75
    %p84 = scmp.eq.s32.totalorder %s15, 1
    %p85 = por %p83, %p84
    %p86 = scmp.ne.s32.totalorder %s75, %s76
    %p87 = scmp.eq.s32.totalorder %s15, 0
    %p88 = por %p86, %p87
    %p89 = scmp.ne.s32.totalorder %s75, %s76
    %p90 = scmp.eq.s32.totalorder %s16, 1
    %p91 = por %p89, %p90
    %p93 = scmp.ne.s32.totalorder %s76, %s92
    %p94 = scmp.eq.s32.totalorder %s16, 0
    %p95 = por %p93, %p94
    %s96 = ssub.s32 %s10, %s17
    %p97 = scmp.eq.s32.totalorder %s96, 0
    %s99 = sadd.s32 %s98, 1
    %s100 = scalar_select %p97, %s98, %s99
    %p103 = pneg %p97
    %p104 = scmp.eq.s32.totalorder %s10, 1
    %p105 = por %p103, %p104
    %p106 = scmp.ne.s32.totalorder %s98, %s101
    %p107 = scmp.eq.s32.totalorder %s10, 0
    %p108 = por %p106, %p107
    %p109 = scmp.ne.s32.totalorder %s98, %s101
    %p110 = scmp.eq.s32.totalorder %s15, 1
    %p111 = por %p109, %p110
    %p112 = scmp.ne.s32.totalorder %s101, %s102
    %p113 = scmp.eq.s32.totalorder %s15, 0
    %p114 = por %p112, %p113
    %p115 = scmp.ne.s32.totalorder %s101, %s102
    %p116 = scmp.eq.s32.totalorder %s16, 1
    %p117 = por %p115, %p116
    %p119 = scmp.ne.s32.totalorder %s102, %s118
    %p120 = scmp.eq.s32.totalorder %s16, 0
    %p121 = por %p119, %p120
    %s122 = ssub.s32 %s10, %s17
    %p123 = scmp.eq.s32.totalorder %s122, 0
    %s125 = sadd.s32 %s124, 1
    %s126 = scalar_select %p123, %s124, %s125
    %p129 = pneg %p123
    %p130 = scmp.eq.s32.totalorder %s10, 1
    %p131 = por %p129, %p130
    %p132 = scmp.ne.s32.totalorder %s124, %s127
    %p133 = scmp.eq.s32.totalorder %s10, 0
    %p134 = por %p132, %p133
    %p135 = scmp.ne.s32.totalorder %s124, %s127
    %p136 = scmp.eq.s32.totalorder %s15, 1
    %p137 = por %p135, %p136
    %p138 = scmp.ne.s32.totalorder %s127, %s128
    %p139 = scmp.eq.s32.totalorder %s15, 0
    %p140 = por %p138, %p139
    %p141 = scmp.ne.s32.totalorder %s127, %s128
    %p142 = scmp.eq.s32.totalorder %s16, 1
    %p143 = por %p141, %p142
    %p145 = scmp.ne.s32.totalorder %s128, %s144
    %p146 = scmp.eq.s32.totalorder %s16, 0
    %p147 = por %p145, %p146
    %p148 = scmp.le.s32.totalorder 1, %s10
    %p149 = scmp.lt.s32.totalorder %s10, 3
    %p150 = pnand %p148, %p149
    %p151 = pneg %p150
    // Predicated region
    $region9: #{adaptive_instance_norm_pp.1} parent=5 // pred_check
      _
    $region10: #{adaptive_instance_norm_pp.1} parent=5 // pred_check_branch
      %153 = sbr.rel (%p150) target = $region12
    $region11: #{adaptive_instance_norm_pp.1} parent=5 // pred_region
      %s154 = ssub.s32 %s10, 1
    $region12: #{adaptive_instance_norm_pp.1} parent=5 // pred_fallthru
      _
    %p155 = scmp.lt.s32.totalorder %s10, 2
    // Predicated region
    $region13: #{adaptive_instance_norm_pp.1} parent=5 // pred_check
      %p156 = pneg %p155
    $region14: #{adaptive_instance_norm_pp.1} parent=5 // pred_check_branch
      %158 = sbr.rel (%p156) target = $region16
    $region15: #{adaptive_instance_norm_pp.1} parent=5 // pred_region
      // Predicated region
      $region17: #{adaptive_instance_norm_pp.1} parent=15 // pred_check
        %p159 = pneg %p30
      $region18: #{adaptive_instance_norm_pp.1} parent=15 // pred_check_branch
        %161 = sbr.rel (%p159) target = $region20
      $region19: #{adaptive_instance_norm_pp.1} parent=15 // pred_region
        %p162 = scmp.lt.s32.totalorder %s10, 1
        %s163 = scalar_select %p162, %s10, 1
        %s164 = smul.addr %s163, 2
        %s165 = smul.addr %s164, 4
        %s166 = scalar_lea.vmem %s0, %s165
      $region20: #{adaptive_instance_norm_pp.1} parent=15 // pred_fallthru
        _
      // Predicated region
      $region21: #{adaptive_instance_norm_pp.1} parent=15 // pred_check
        %p167 = pneg %p56
      $region22: #{adaptive_instance_norm_pp.1} parent=15 // pred_check_branch
        %169 = sbr.rel (%p167) target = $region24
      $region23: #{adaptive_instance_norm_pp.1} parent=15 // pred_region
        %p170 = scmp.lt.s32.totalorder %s10, 1
        %s171 = scalar_select %p170, %s10, 1
        %s172 = smul.addr %s171, 4
        %s173 = scalar_lea.vmem %s1, %s172
      $region24: #{adaptive_instance_norm_pp.1} parent=15 // pred_fallthru
        _
      // Predicated region
      $region25: #{adaptive_instance_norm_pp.1} parent=15 // pred_check
        %p174 = pneg %p82
      $region26: #{adaptive_instance_norm_pp.1} parent=15 // pred_check_branch
        %176 = sbr.rel (%p174) target = $region28
      $region27: #{adaptive_instance_norm_pp.1} parent=15 // pred_region
        %p177 = scmp.lt.s32.totalorder %s10, 1
        %s178 = scalar_select %p177, %s10, 1
        %s179 = smul.addr %s178, 4
        %s180 = scalar_lea.vmem %s2, %s179
      $region28: #{adaptive_instance_norm_pp.1} parent=15 // pred_fallthru
        _
      // Predicated region
      $region29: #{adaptive_instance_norm_pp.1} parent=15 // pred_check
        %p181 = pneg %p108
      $region30: #{adaptive_instance_norm_pp.1} parent=15 // pred_check_branch
        %183 = sbr.rel (%p181) target = $region32
      $region31: #{adaptive_instance_norm_pp.1} parent=15 // pred_region
        %p184 = scmp.lt.s32.totalorder %s10, 1
        %s185 = scalar_select %p184, %s10, 1
        %s186 = smul.addr %s185, 4
        %s187 = scalar_lea.vmem %s3, %s186
      $region32: #{adaptive_instance_norm_pp.1} parent=15 // pred_fallthru
        _
    $region16: #{adaptive_instance_norm_pp.1} parent=5 // pred_fallthru
      _
    %p188 = scmp.le.s32.totalorder 1, %s10
    %p189 = scmp.lt.s32.totalorder %s10, 3
    %p190 = pnand %p188, %p189
    %p191 = pneg %p190
    // Predicated region
    $region33: #{adaptive_instance_norm_pp.1} parent=5 // pred_check
      _
    $region34: #{adaptive_instance_norm_pp.1} parent=5 // pred_check_branch
      %193 = sbr.rel (%p190) target = $region36
    $region35: #{adaptive_instance_norm_pp.1} parent=5 // pred_region
      %s194 = ssub.s32 %s10, 1
      %p195 = scmp.lt.s32.totalorder %s15, 1
      %s196 = scalar_select %p195, %s15, 1
      %s197 = smul.addr %s196, 2
      %s198 = smul.addr %s197, 4
      %s199 = scalar_lea.vmem %s0, %s198
      %p200 = pneg %p36
      %p201 = pneg %p33
      %p202 = scmp.lt.s32.totalorder %s15, 1
      %s203 = scalar_select %p202, %s15, 1
      %s204 = smul.addr %s203, 4
      %s205 = scalar_lea.vmem %s1, %s204
      %p206 = pneg %p62
      %p207 = pneg %p59
      %p208 = scmp.lt.s32.totalorder %s15, 1
      %s209 = scalar_select %p208, %s15, 1
      %s210 = smul.addr %s209, 4
      %s211 = scalar_lea.vmem %s2, %s210
      %p212 = pneg %p88
      %p213 = pneg %p85
      %p214 = scmp.lt.s32.totalorder %s15, 1
      %s215 = scalar_select %p214, %s15, 1
      %s216 = smul.addr %s215, 4
      %s217 = scalar_lea.vmem %s3, %s216
      %p218 = pneg %p114
      %p219 = pneg %p111
      %p220 = pneg %p140
      %p221 = pneg %p137
      %p222 = scmp.lt.s32.totalorder %s15, 1
      %s223 = scalar_select %p222, %s15, 1
      %s224 = smul.addr %s223, 2
      %s225 = smul.addr %s224, 4
      %s226 = scalar_lea.vmem %s4, %s225
      %p227 = scmp.lt.s32.totalorder %s15, 1
      %s228 = scalar_select %p227, %s15, 1
      %s229 = smul.addr %s228, 2
      %s230 = smul.addr %s229, 4
      %s231 = scalar_lea.vmem %s0, %s230
      %p232 = scmp.lt.s32.totalorder %s15, 1
      %s233 = scalar_select %p232, %s15, 1
      %s234 = smul.addr %s233, 4
      %s235 = scalar_lea.vmem %s1, %s234
      %p236 = scmp.lt.s32.totalorder %s15, 1
      %s237 = scalar_select %p236, %s15, 1
      %s238 = smul.addr %s237, 4
      %s239 = scalar_lea.vmem %s2, %s238
      %p240 = scmp.lt.s32.totalorder %s15, 1
      %s241 = scalar_select %p240, %s15, 1
      %s242 = smul.addr %s241, 4
      %s243 = scalar_lea.vmem %s3, %s242
      %p244 = scmp.lt.s32.totalorder %s15, 1
      %s245 = scalar_select %p244, %s15, 1
      %s246 = smul.addr %s245, 2
      %s247 = smul.addr %s246, 4
      %s248 = scalar_lea.vmem %s4, %s247
      %v249 = vld [vmem:[%s231] sm:$0xff]
      %v251 = vcombine.high %v249, %v249
      %vm253 = vcmask 1043456
      %v254 = vsel %vm253, %v249, 0.0
      %v255 = vsel %vm253, %v251, 0.0
      %v256 = vadd.f32 %v254, %v255
      %257 = vadd.xlane.f32.xlu0 %v256
      %v258 = vpop.xlane.xlu0 %257
      %v259 = vmul.f32 %v258, 0.00390625
      %v262 = vunpack.c.l.s4 839922192
      %v263 = vunpack.c.0.s8 %v262
      %v264 = vlaneseq
      %v265 = vshrl.u32 %v264, 7
      %v266 = vsub.s32 %v263, %v265
      %v267 = vrot.slane %v259, %v266
      %v269 = vsub.f32 %v249, %v267
      %v270 = vmul.f32 %v269, %v269
      %v272 = vcombine.high %v270, %v270
      %v274 = vsel %vm253, %v270, 0.0
      %v275 = vsel %vm253, %v272, 0.0
      %v276 = vadd.f32 %v274, %v275
      %277 = vadd.xlane.f32.xlu0 %v276
      %v278 = vpop.xlane.xlu0 %277
      %v279 = vmax.f32 %v278, 0.0
      %v280 = vrcp.pop 255.0
      %v281 = vmul.f32 %v279, %v280
      %v282 = vrsqrt.pop %v281
      %v283 = vmul.f32 %v281, %v282
      %vm284 = vcmp.eq.f32.partialorder %v281, inf
      %v285 = vsel %vm284, %v281, %v283
      %vm286 = vcmp.eq.f32.partialorder %v281, 0.0
      %v287 = vand.u32 %v281, 2147483648
      %v288 = vsel %vm286, %v287, %v285
      %v289 = vsel %vm253, %v259, 0.0
      %v290 = vrot.slane %v289, 4
      %v291 = vadd.f32 %v289, %v290
      %v292 = vrot.slane %v291, 2
      %v293 = vadd.f32 %v291, %v292
      %v294 = vrot.slane %v293, 1
      %v295 = vadd.f32 %v293, %v294
      %v296 = vrcp.pop 4.0
      %v297 = vmul.f32 %v295, %v296
      %v298 = vsub.f32 %v259, %v297
      %v299 = vmul.f32 %v298, %v298
      %v300 = vsel %vm253, %v299, 0.0
      %v301 = vrot.slane %v300, 4
      %v302 = vadd.f32 %v300, %v301
      %v303 = vrot.slane %v302, 2
      %v304 = vadd.f32 %v302, %v303
      %v305 = vrot.slane %v304, 1
      %v306 = vadd.f32 %v304, %v305
      %v307 = vrcp.pop 3.0
      %v308 = vmul.f32 %v306, %v307
      %v309 = vrsqrt.pop %v308
      %v310 = vmul.f32 %v308, %v309
      %vm311 = vcmp.eq.f32.partialorder %v308, inf
      %v312 = vsel %vm311, %v308, %v310
      %vm313 = vcmp.eq.f32.partialorder %v308, 0.0
      %v314 = vand.u32 %v308, 2147483648
      %v315 = vsel %vm313, %v314, %v312
      %v316 = vld [vmem:[%s235] sm:$0xf]
      %v317 = vld [vmem:[%s239] sm:$0xf]
      %v318 = vld [vmem:[%s243] sm:$0xf]
      %v319 = vadd.f32 %v288, 1e-06
      %v320 = vrcp.pop %v319
      %v321 = vmul.f32 %v316, %v320
      %v322 = vmul.f32 %v318, %v298
      %v323 = vadd.f32 %v315, 1e-06
      %v324 = vrcp.pop %v323
      %v325 = vmul.f32 %v322, %v324
      %v326 = vadd.f32 %v317, %v325
      %v327 = vmul.f32 %v321, %v259
      %v328 = vsub.f32 %v326, %v327
      %330 = vset.pattern.permute.xlu0 0
      %331 = vperm.xlu0 %330, %v321
      %v332 = vpop.permute.xlu0 %331
      %v334 = vmul.f32 %v332, %v249
      %v335 = vmul.f32 %v332, %v251
      %337 = vset.pattern.permute.xlu0 0
      %338 = vperm.xlu0 %337, %v328
      %v339 = vpop.permute.xlu0 %338
      %v341 = vadd.f32 %v334, %v339
      %v342 = vadd.f32 %v335, %v339
      %v345 = vcombine.low %v341, %v342
      %347 = vst [vmem:[%s248] sm:$0xff] %v345
      %p348 = scmp.lt.s32.totalorder %s15, 1
      %s349 = scalar_select %p348, %s15, 1
      %s350 = smul.addr %s349, 2
      %s351 = smul.addr %s350, 4
      %s352 = scalar_lea.vmem %s4, %s351
      // Predicated region
      $region37: #{adaptive_instance_norm_pp.1} parent=35 // pred_check
        %p353 = pneg %p137
      $region38: #{adaptive_instance_norm_pp.1} parent=35 // pred_check_branch
        %355 = sbr.rel (%p353) target = $region40
      $region39: #{adaptive_instance_norm_pp.1} parent=35 // pred_region
        _
      $region40: #{adaptive_instance_norm_pp.1} parent=35 // pred_fallthru
        _
    $region36: #{adaptive_instance_norm_pp.1} parent=5 // pred_fallthru
      _
    %p356 = scmp.le.s32.totalorder 2, %s10
    // Predicated region
    $region41: #{adaptive_instance_norm_pp.1} parent=5 // pred_check
      %p357 = pneg %p356
    $region42: #{adaptive_instance_norm_pp.1} parent=5 // pred_check_branch
      %359 = sbr.rel (%p357) target = $region44
    $region43: #{adaptive_instance_norm_pp.1} parent=5 // pred_region
      %s360 = ssub.s32 %s10, 2
      // Predicated region
      $region45: #{adaptive_instance_norm_pp.1} parent=43 // pred_check
        %p361 = pneg %p143
      $region46: #{adaptive_instance_norm_pp.1} parent=43 // pred_check_branch
        %363 = sbr.rel (%p361) target = $region48
      $region47: #{adaptive_instance_norm_pp.1} parent=43 // pred_region
        %p364 = scmp.lt.s32.totalorder %s16, 1
        %s365 = scalar_select %p364, %s16, 1
        %s366 = smul.addr %s365, 2
        %s367 = smul.addr %s366, 4
        %s368 = scalar_lea.vmem %s4, %s367
      $region48: #{adaptive_instance_norm_pp.1} parent=43 // pred_fallthru
        _
    $region44: #{adaptive_instance_norm_pp.1} parent=5 // pred_fallthru
      _
  $region6: #{adaptive_instance_norm_pp.1} parent=0 // loop_footer
    %s14 = sadd.s32 1, %s10
  $region7: #{adaptive_instance_norm_pp.1} parent=0 // loop_footer_branch
    %9 = sbr.rel target = $region3
  $region8: #{adaptive_instance_norm_pp.1} parent=0 // loop_exit
    _

</llo_original>
